<compile_context>
chip_gen: v5e
topology: v5e:2x2
jax: 0.10.0
libtpu: 0.0.40
codegen_flags: <defaults>
</compile_context>

<pallas_src>
import functools

import jax
import jax.numpy as jnp
from jax.experimental import pallas as pl
from jax.experimental.pallas import tpu as pltpu


def _lsce_kernel(logits_ref, target_ref, out_ref, *,
                 eps: float, num_classes: int, num_rows: int,
                 row_tile: int, tiles_per_split: int, mask_rows: bool):
    p = pl.program_id(0)   # parallel split (TensorCore) axis
    i = pl.program_id(1)   # sequential row-tile axis (reduction axis, last)

    @pl.when(i == 0)
    def _init():
        out_ref[...] = jnp.zeros_like(out_ref)

    x = logits_ref[...].astype(jnp.float32)                       # (TM, C)

    # Numerically stable row-wise log-sum-exp (lane reductions).
    m = jnp.max(x, axis=-1, keepdims=True)                        # (TM, 1)
    lse = jnp.log(jnp.sum(jnp.exp(x - m), axis=-1, keepdims=True)) + m

    # Plain row sum of x (smoothing term uses: -sum_c logp = C*lse - sum_c x).
    sum_x = jnp.sum(x, axis=-1, keepdims=True)                    # (TM, 1)

    # NLL pick via iota compare (no gather): -logp[target] = lse - x[target].
    tgt = target_ref[...]                                         # (TM, 1) int32
    cls = jax.lax.broadcasted_iota(jnp.int32, x.shape, 1)         # (TM, C)
    picked = jnp.sum(jnp.where(cls == tgt, x, 0.0), axis=-1, keepdims=True)

    smooth = float(num_classes) * lse - sum_x                     # -sum_c logp
    nll = lse - picked                                            # -logp[target]
    contrib = (eps / float(num_classes)) * smooth + (1.0 - eps) * nll

    if mask_rows:
        base = (p * tiles_per_split + i) * row_tile
        rows = base + jax.lax.broadcasted_iota(jnp.int32, (row_tile, 1), 0)
        contrib = jnp.where(rows < num_rows, contrib, 0.0)

    out_ref[...] += contrib


def _round_up(x: int, m: int) -> int:
    return ((x + m - 1) // m) * m


def _pick_tiling(n: int, c: int, itemsize: int):
    """Choose (row_tile, vmem_limit_bytes) from the device's VMEM capacity."""
    try:
        info = pltpu.get_tpu_info()
        phys = int(getattr(info, "vmem_capacity_bytes", 0)) or 64 * 1024 * 1024
    except Exception:
        phys = 64 * 1024 * 1024        # conservative (v7x per-core VMEM)
    vmem_limit = int(phys * 0.75)      # leave headroom; >= default scoped limit
    mult = 16 if itemsize == 2 else 8  # sublane packing (bf16 vs f32)
    # Double-buffered logits stream should use at most ~half of the limit.
    rows = (vmem_limit // 2) // (2 * c * itemsize)
    rows = max(mult, (rows // mult) * mult)
    rows = min(rows, 1024)                       # amortization saturates ~512+
    rows = min(rows, _round_up(n, mult))         # no point tiling past N
    return rows, vmem_limit


def label_smoothing_cross_entropy(logits, target, *, eps=0.1, reduction="mean",
                                  row_tile=None, num_splits=None):
    """logits: (N, C) float32/bfloat16; target: (N,) int. Returns scalar f32 loss."""
    assert reduction in ("mean", "sum")
    n, c = logits.shape
    itemsize = jnp.dtype(logits.dtype).itemsize
    auto_tile, vmem_limit = _pick_tiling(n, c, itemsize)
    mult = 16 if itemsize == 2 else 8
    if row_tile is None:
        row_tile = auto_tile
    row_tile = max(mult, (int(row_tile) // mult) * mult)

    tiles_total = -(-n // row_tile)                       # cdiv
    if num_splits is None:
        num_splits = 2 if tiles_total >= 2 else 1         # 2 TCs on v7x
    num_splits = max(1, min(int(num_splits), tiles_total))
    tiles_per_split = -(-tiles_total // num_splits)
    n_pad = num_splits * tiles_per_split * row_tile
    mask_rows = n_pad != n

    logits_p = logits if not mask_rows else jnp.pad(logits, ((0, n_pad - n), (0, 0)))
    target2d = target.astype(jnp.int32).reshape(n, 1)
    target_p = target2d if not mask_rows else jnp.pad(target2d, ((0, n_pad - n), (0, 0)))

    kernel = functools.partial(
        _lsce_kernel, eps=float(eps), num_classes=c, num_rows=n,
        row_tile=row_tile, tiles_per_split=tiles_per_split, mask_rows=mask_rows)

    per_row = pl.pallas_call(
        kernel,
        out_shape=jax.ShapeDtypeStruct((num_splits * row_tile, 1), jnp.float32),
        grid_spec=pltpu.PrefetchScalarGridSpec(
            num_scalar_prefetch=0,
            grid=(num_splits, tiles_per_split),
            in_specs=[
                pl.BlockSpec((row_tile, c),
                             lambda p, i: (p * tiles_per_split + i, 0)),
                pl.BlockSpec((row_tile, 1),
                             lambda p, i: (p * tiles_per_split + i, 0)),
            ],
            # Output block depends only on the parallel split -> it stays
            # resident in VMEM across the inner (reduction) axis.
            out_specs=pl.BlockSpec((row_tile, 1), lambda p, i: (p, 0)),
        ),
        compiler_params=pltpu.CompilerParams(
            dimension_semantics=("parallel", "arbitrary"),
            vmem_limit_bytes=int(vmem_limit)),
    )(logits_p, target_p)

    total = jnp.sum(per_row)
    if reduction == "mean":
        total = total / float(n)
    return total


def _reference(logits, target, eps=0.1, reduction="mean"):
    c = logits.shape[-1]
    logp = jax.nn.log_softmax(logits.astype(jnp.float32), axis=-1)
    if reduction == "sum":
        loss = -jnp.sum(logp)
        nll = -jnp.sum(jnp.take_along_axis(logp, target[:, None], axis=-1))
    else:
        loss = jnp.mean(-jnp.sum(logp, axis=-1))
        nll = jnp.mean(-jnp.take_along_axis(logp, target[:, None], axis=-1))
    return loss * eps / c + (1.0 - eps) * nll


# TODO(synk): reduction='none' (per-row loss vector) is not implemented; only
# 'mean' (module default) and 'sum' are supported.

if __name__ == "__main__":
    key = jax.random.PRNGKey(0)
    k1, k2, k3, k4, k5, k6 = jax.random.split(key, 6)

    ok = True

    # 1) Small f32 case, auto tile (single tile, single split).
    N, C = 16, 128
    logits = jax.random.normal(k1, (N, C), dtype=jnp.float32)
    target = jax.random.randint(k2, (N,), 0, C, dtype=jnp.int32)
    loss = jax.block_until_ready(
        label_smoothing_cross_entropy(logits, target, eps=0.1, reduction="mean"))
    ref = _reference(logits, target, eps=0.1, reduction="mean")
    ok &= bool(jnp.allclose(loss, ref, atol=1e-4, rtol=1e-4))

    # 2) Ragged N (padding + row masking), forced small tile -> 2 splits, 3 tiles each.
    N2, C2 = 40, 256
    logits2 = jax.random.normal(k3, (N2, C2), dtype=jnp.float32)
    target2 = jax.random.randint(k4, (N2,), 0, C2, dtype=jnp.int32)
    loss2 = jax.block_until_ready(
        label_smoothing_cross_entropy(logits2, target2, eps=0.1, reduction="mean",
                                      row_tile=8, num_splits=2))
    ref2 = _reference(logits2, target2, eps=0.1, reduction="mean")
    ok &= bool(jnp.allclose(loss2, ref2, atol=1e-4, rtol=1e-4))

    # 3) bf16 logits (kept bf16 in HBM, cast in-kernel), 'sum' reduction, 2 splits.
    N3, C3 = 32, 128
    logits3 = jax.random.normal(k5, (N3, C3), dtype=jnp.float32).astype(jnp.bfloat16)
    target3 = jax.random.randint(k6, (N3,), 0, C3, dtype=jnp.int32)
    loss3 = jax.block_until_ready(
        label_smoothing_cross_entropy(logits3, target3, eps=0.1, reduction="sum",
                                      row_tile=16, num_splits=2))
    ref3 = _reference(logits3, target3, eps=0.1, reduction="sum")
    ok &= bool(jnp.allclose(loss3, ref3, atol=1e-3, rtol=1e-4))

    assert ok, (loss, ref, loss2, ref2, loss3, ref3)
    print("KERNEL_OK")
</pallas_src>

<mosaic_0001>
module attributes {stable_mosaic.version = 11 : i64} {
  func.func @_lsce_kernel(%arg0: i32, %arg1: i32, %arg2: memref<16x128xf32, #tpu.memory_space<vmem>>, %arg3: memref<16x1xi32, #tpu.memory_space<vmem>>, %arg4: memref<16x1xf32, #tpu.memory_space<vmem>>) attributes {dimension_semantics = [#tpu.dimension_semantics<parallel>, #tpu.dimension_semantics<arbitrary>], iteration_bounds = array<i64: 1, 1>, scalar_prefetch = 0 : i64, scratch_operands = 0 : i64, tpu.core_type = #tpu.core_type<tc>, window_params = [{transform_indices = @transform_0, window_bounds = array<i64: 16, 128>}, {transform_indices = @transform_1, window_bounds = array<i64: 16, 1>}, {transform_indices = @transform_2, window_bounds = array<i64: 16, 1>}]} {
    %c0_i32 = arith.constant 0 : i32
    %0 = arith.cmpi eq, %arg1, %c0_i32 : i32
    %1 = arith.extui %0 : i1 to i32
    %c0_i32_0 = arith.constant 0 : i32
    %2 = arith.cmpi ne, %1, %c0_i32_0 : i32
    scf.if %2 {
      %cst_15 = arith.constant 0.000000e+00 : f32
      %35 = vector.broadcast %cst_15 : f32 to vector<16x1xf32>
      %c0_16 = arith.constant 0 : index
      %c0_17 = arith.constant 0 : index
      %36 = vector.load %arg4[%c0_16, %c0_17] : memref<16x1xf32, #tpu.memory_space<vmem>>, vector<16x1xf32>
      tpu.vector_store %arg4[%c0_16, %c0_17], %35 {strides = array<i32>} : memref<16x1xf32, #tpu.memory_space<vmem>>, vector<16x1xf32>,
    } else {
    }
    %c0 = arith.constant 0 : index
    %c0_1 = arith.constant 0 : index
    %3 = vector.load %arg2[%c0, %c0_1] : memref<16x128xf32, #tpu.memory_space<vmem>>, vector<16x128xf32>
    %cst = arith.constant dense<0xFF800000> : vector<16xf32>
    %4 = vector.multi_reduction <maximumf>, %3, %cst [1] : vector<16x128xf32> to vector<16xf32>
    %5 = vector.shape_cast %4 : vector<16xf32> to vector<16x1xf32>
    %6 = vector.broadcast %5 : vector<16x1xf32> to vector<16x128xf32>
    %7 = arith.subf %3, %6 : vector<16x128xf32>
    %8 = math.exp %7 : vector<16x128xf32>
    %cst_2 = arith.constant dense<0.000000e+00> : vector<16xf32>
    %9 = vector.multi_reduction <add>, %8, %cst_2 [1] : vector<16x128xf32> to vector<16xf32>
    %10 = vector.shape_cast %9 : vector<16xf32> to vector<16x1xf32>
    %11 = math.log %10 : vector<16x1xf32>
    %12 = arith.addf %11, %5 : vector<16x1xf32>
    %cst_3 = arith.constant dense<0.000000e+00> : vector<16xf32>
    %13 = vector.multi_reduction <add>, %3, %cst_3 [1] : vector<16x128xf32> to vector<16xf32>
    %14 = vector.shape_cast %13 : vector<16xf32> to vector<16x1xf32>
    %c0_4 = arith.constant 0 : index
    %c0_5 = arith.constant 0 : index
    %15 = vector.load %arg3[%c0_4, %c0_5] : memref<16x1xi32, #tpu.memory_space<vmem>>, vector<16x1xi32>
    %16 = tpu.iota {dimensions = array<i32: 1>} : vector<16x128xi32>
    %17 = vector.broadcast %15 : vector<16x1xi32> to vector<16x128xi32>
    %18 = arith.cmpi eq, %16, %17 : vector<16x128xi32>
    %cst_6 = arith.constant 0.000000e+00 : f32
    %19 = vector.broadcast %cst_6 : f32 to vector<16x128xf32>
    %20 = arith.select %18, %3, %19 : vector<16x128xi1>, vector<16x128xf32>
    %cst_7 = arith.constant dense<0.000000e+00> : vector<16xf32>
    %21 = vector.multi_reduction <add>, %20, %cst_7 [1] : vector<16x128xf32> to vector<16xf32>
    %22 = vector.shape_cast %21 : vector<16xf32> to vector<16x1xf32>
    %cst_8 = arith.constant 1.280000e+02 : f32
    %23 = vector.broadcast %cst_8 : f32 to vector<16x1xf32>
    %24 = arith.mulf %23, %12 : vector<16x1xf32>
    %25 = arith.subf %24, %14 : vector<16x1xf32>
    %26 = arith.subf %12, %22 : vector<16x1xf32>
    %cst_9 = arith.constant 7.812500e-04 : f32
    %27 = vector.broadcast %cst_9 : f32 to vector<16x1xf32>
    %28 = arith.mulf %27, %25 : vector<16x1xf32>
    %cst_10 = arith.constant 0.899999976 : f32
    %29 = vector.broadcast %cst_10 : f32 to vector<16x1xf32>
    %30 = arith.mulf %29, %26 : vector<16x1xf32>
    %31 = arith.addf %28, %30 : vector<16x1xf32>
    %c0_11 = arith.constant 0 : index
    %c0_12 = arith.constant 0 : index
    %32 = vector.load %arg4[%c0_11, %c0_12] : memref<16x1xf32, #tpu.memory_space<vmem>>, vector<16x1xf32>
    %33 = arith.addf %32, %31 : vector<16x1xf32>
    %c0_13 = arith.constant 0 : index
    %c0_14 = arith.constant 0 : index
    %34 = vector.load %arg4[%c0_13, %c0_14] : memref<16x1xf32, #tpu.memory_space<vmem>>, vector<16x1xf32>
    tpu.vector_store %arg4[%c0_13, %c0_14], %33 {strides = array<i32>} : memref<16x1xf32, #tpu.memory_space<vmem>>, vector<16x1xf32>,
    return
  }
  func.func @transform_0(%arg0: i32, %arg1: i32) -> (i32, i32) {
    %c1_i32 = arith.constant 1 : i32
    %0 = arith.muli %arg0, %c1_i32 : i32
    %1 = arith.addi %0, %arg1 : i32
    %c0_i32 = arith.constant 0 : i32
    %c0_i32_0 = arith.constant 0 : i32
    return %1, %c0_i32 : i32, i32
  }
  func.func @transform_1(%arg0: i32, %arg1: i32) -> (i32, i32) {
    %c1_i32 = arith.constant 1 : i32
    %0 = arith.muli %arg0, %c1_i32 : i32
    %1 = arith.addi %0, %arg1 : i32
    %c0_i32 = arith.constant 0 : i32
    %c0_i32_0 = arith.constant 0 : i32
    return %1, %c0_i32 : i32, i32
  }
  func.func @transform_2(%arg0: i32, %arg1: i32) -> (i32, i32) {
    %c0_i32 = arith.constant 0 : i32
    %c0_i32_0 = arith.constant 0 : i32
    return %arg0, %c0_i32 : i32, i32
  }
}

</mosaic_0001>

<llo_original>
// kernel: tpu_custom_call.1
$region0: #{tpu_custom_call.1}
  #allocation0 [shape = 'u32[]', space=smem, size = 0x4, offset = 0x4, fixed_abs, tag = 'smem constant byte address 0x4 - core index']
  #allocation1 [shape = 'u32[72,128]{1,0:T(1,128)}', space=vmem, size = 0x9000, scoped, tag = 'internal scratch']
  %s0 = inlined_call_operand.vmem [shape: f32[16,128], index: 0, kind: input, shape index: {}]
  %s1 = inlined_call_operand.vmem [shape: s32[16,1], index: 1, kind: input, shape index: {}]
  %s2 = inlined_call_operand.vmem [shape: f32[16,1], index: 2, kind: output, shape index: {}]
  %s3 = sld [smem:[#allocation0]]
  $region22: #{tpu_custom_call.1} parent=0
    _
  %s5 = ssub.s32 1, %s3
  %s6 = scalar_select 0, %s5, %s3
  // Predicated region
  $region2: #{tpu_custom_call.1} parent=0 // pred_check
    _
  $region3: #{tpu_custom_call.1} parent=0 // pred_check_branch
    %8 = sbr.rel (0) target = $region5
  $region4: #{tpu_custom_call.1} parent=0 // pred_region
    %s9 = sadd.s32 0, 0
    %s10 = smul.u32 2, %s9
    %p11 = scmp.lt.s32.totalorder %s10, 1
    %s12 = scalar_select %p11, %s10, 1
    %s13 = smul.addr %s12, 8
    %s14 = scalar_lea.vmem %s0, %s13
    %s15 = sadd.s32 0, 0
    %s16 = smul.u32 2, %s15
  $region5: #{tpu_custom_call.1} parent=0 // pred_fallthru
    _
  // Predicated region
  $region6: #{tpu_custom_call.1} parent=0 // pred_check
    _
  $region7: #{tpu_custom_call.1} parent=0 // pred_check_branch
    %18 = sbr.rel (0) target = $region9
  $region8: #{tpu_custom_call.1} parent=0 // pred_region
    %s19 = sadd.s32 0, 0
    %s20 = smul.u32 2, %s19
    %p21 = scmp.lt.s32.totalorder %s20, 1
    %s22 = scalar_select %p21, %s20, 1
    %s23 = smul.addr %s22, 8
    %s24 = scalar_lea.vmem %s1, %s23
    %s25 = sadd.s32 0, 0
    %s26 = smul.u32 2, %s25
  $region9: #{tpu_custom_call.1} parent=0 // pred_fallthru
    _
  %s27 = sadd.s32 0, 0
  %s28 = smul.u32 2, %s27
  %p29 = scmp.lt.s32.totalorder %s28, 1
  %s30 = scalar_select %p29, %s28, 1
  %s31 = smul.addr %s30, 8
  %s32 = scalar_lea.vmem %s0, %s31
  %s33 = sadd.s32 0, 0
  %s34 = smul.u32 2, %s33
  %p35 = scmp.lt.s32.totalorder %s34, 1
  %s36 = scalar_select %p35, %s34, 1
  %s37 = smul.addr %s36, 8
  %s38 = scalar_lea.vmem %s1, %s37
  %s39 = sadd.s32 0, 0
  %s40 = smul.u32 2, %s39
  %p41 = scmp.lt.s32.totalorder %s40, 1
  %s42 = scalar_select %p41, %s40, 1
  %s43 = smul.addr %s42, 8
  %s44 = scalar_lea.vmem %s0, %s43
  %s45 = sadd.s32 0, 0
  %s46 = smul.u32 2, %s45
  %s47 = sadd.s32 0, 0
  %s48 = smul.u32 2, %s47
  %p49 = scmp.lt.s32.totalorder %s48, 1
  %s50 = scalar_select %p49, %s48, 1
  %s51 = smul.addr %s50, 8
  %s52 = scalar_lea.vmem %s1, %s51
  %s53 = sadd.s32 0, 0
  %s54 = smul.u32 2, %s53
  %p55 = scmp.eq.s32.totalorder 0, 0
  // Predicated region
  $region10: #{tpu_custom_call.1} parent=0 // pred_check
    %p56 = pneg %p55
  $region11: #{tpu_custom_call.1} parent=0 // pred_check_branch
    %58 = sbr.rel (%p56) target = $region13
  $region12: #{tpu_custom_call.1} parent=0 // pred_region
    %vm59 = vcmask 7168
    %60 = vst.msk [vmem:[%s2] sm:$0xff] %vm59, 0.0
    %61 = vst.msk [vmem:[%s2 + $0x8] sm:$0xff] %vm59, 0.0
  $region13: #{tpu_custom_call.1} parent=0 // pred_fallthru
    _
  %v62 = vld [vmem:[%s44] sm:$0xff]
  %v63 = vld [vmem:[%s44 + $0x8] sm:$0xff]
  %64 = vmax.xlane.f32.xlu0 %v62
  %v65 = vpop.xlane.xlu0 %64
  %66 = vmax.xlane.f32.xlu0 %v63
  %v67 = vpop.xlane.xlu0 %66
  %v68 = vsub.f32 %v62, %v65
  %v69 = vsub.f32 %v63, %v67
  %v70 = vmul.f32 %v68, 1.442695
  %v71 = vpow.pop %v70
  %v72 = vmul.f32 %v69, 1.442695
  %v73 = vpow.pop %v72
  %74 = vadd.xlane.f32.xlu0 %v71
  %v75 = vpop.xlane.xlu0 %74
  %76 = vadd.xlane.f32.xlu0 %v73
  %v77 = vpop.xlane.xlu0 %76
  %v78 = vlog2.pop %v75
  %v79 = vmul.f32 %v78, 0.6931472
  %v80 = vlog2.pop %v77
  %v81 = vmul.f32 %v80, 0.6931472
  %v82 = vadd.f32 %v79, %v65
  %v83 = vadd.f32 %v81, %v67
  %84 = vadd.xlane.f32.xlu0 %v62
  %v85 = vpop.xlane.xlu0 %84
  %86 = vadd.xlane.f32.xlu0 %v63
  %v87 = vpop.xlane.xlu0 %86
  %v88 = vld [vmem:[%s52] sm:$0xff]
  %v89 = vld [vmem:[%s52 + $0x8] sm:$0xff]
  %v90 = vlaneseq
  %v91 = vand.u32 %v90, 127
  %92 = vset.pattern.permute.xlu0 0
  %93 = vperm.xlu0 %92, %v88
  %v94 = vpop.permute.xlu0 %93
  %95 = vset.pattern.permute.xlu0 0
  %96 = vperm.xlu0 %95, %v89
  %v97 = vpop.permute.xlu0 %96
  %vm98 = vcmp.eq.s32.totalorder %v91, %v94
  %vm99 = vcmp.eq.s32.totalorder %v91, %v97
  %v100 = vsel %vm98, %v62, 0.0
  %v101 = vsel %vm99, %v63, 0.0
  %102 = vadd.xlane.f32.xlu0 %v100
  %v103 = vpop.xlane.xlu0 %102
  %104 = vadd.xlane.f32.xlu0 %v101
  %v105 = vpop.xlane.xlu0 %104
  %v106 = vmul.f32 %v82, 128.0
  %v107 = vmul.f32 %v83, 128.0
  %v108 = vsub.f32 %v106, %v85
  %v109 = vsub.f32 %v107, %v87
  %v110 = vsub.f32 %v82, %v103
  %v111 = vsub.f32 %v83, %v105
  %v112 = vmul.f32 %v108, 0.00078125
  %v113 = vmul.f32 %v109, 0.00078125
  %v114 = vmul.f32 %v110, 0.9
  %v115 = vmul.f32 %v111, 0.9
  %v116 = vadd.f32 %v112, %v114
  %v117 = vadd.f32 %v113, %v115
  %v118 = vld [vmem:[%s2] sm:$0xff]
  %v119 = vld [vmem:[%s2 + $0x8] sm:$0xff]
  %v120 = vadd.f32 %v118, %v116
  %v121 = vadd.f32 %v119, %v117
  %vm122 = vcmask 7168
  %123 = vst.msk [vmem:[%s2] sm:$0xff] %vm122, %v120
  %124 = vst.msk [vmem:[%s2 + $0x8] sm:$0xff] %vm122, %v121
  // Predicated region
  $region14: #{tpu_custom_call.1} parent=0 // pred_check
    _
  $region15: #{tpu_custom_call.1} parent=0 // pred_check_branch
    %126 = sbr.rel (0) target = $region17
  $region16: #{tpu_custom_call.1} parent=0 // pred_region
    _
  $region17: #{tpu_custom_call.1} parent=0 // pred_fallthru
    _
  // Predicated region
  $region18: #{tpu_custom_call.1} parent=0 // pred_check
    _
  $region19: #{tpu_custom_call.1} parent=0 // pred_check_branch
    %128 = sbr.rel (0) target = $region21
  $region20: #{tpu_custom_call.1} parent=0 // pred_region
    _
  $region21: #{tpu_custom_call.1} parent=0 // pred_fallthru
    _

</llo_original>
